<compile_context>
chip_gen: v5e
topology: v5e:2x2
jax: 0.10.0
libtpu: 0.0.40
codegen_flags: <defaults>
</compile_context>

<pallas_src>
import functools

import jax
import jax.numpy as jnp
from jax import lax
from jax.experimental import pallas as pl
from jax.experimental.pallas import tpu as pltpu

LANE = 128                           # lane width; channel dims padded to this
FEAT_RESIDENT_BYTES = 4 * 1024 * 1024  # per-copy cap for VMEM-resident feat^T


def _round_up(v, m):
    return ((v + m - 1) // m) * m


def _pad2(a, rows, cols, value=0.0):
    return jnp.pad(
        a,
        ((0, rows - a.shape[0]), (0, cols - a.shape[1])),
        constant_values=value,
    )


def _choose_tiling(n):
    """Return (n_pad, tile_dst, tile_src); tiles are multiples of 128 and divide n_pad."""
    if n <= 256:
        n_pad = _round_up(n, 128)
        tile_src = n_pad
        tile_dst = 128 if n_pad >= 256 else n_pad   # >=2 dst tiles when possible (v7x)
    else:
        n_pad = _round_up(n, 512)
        tile_src = 512
        tile_dst = 256 if n_pad <= 1024 else 512
    return n_pad, tile_dst, tile_src


def graph_conv_kernel(featT_ref, adj_ref, dstn_ref, wT_ref, b_ref, outT_ref, acc_ref,
                      *, feat_resident):
    """Grid = (dst_tile d, src_tile s); s is the reduction axis.

    featT_ref: (n_src_tiles, C_in, TILE_SRC) bf16 if resident, else (1, C_in, TILE_SRC)
    adj_ref:   (TILE_SRC, TILE_DST) bf16, natural adj[src, dst] layout
    dstn_ref:  (1, TILE_DST) f32
    wT_ref:    (C_out, C_in) bf16
    b_ref:     (C_out, 1) f32
    outT_ref:  (C_out, TILE_DST) f32
    acc_ref:   (C_in, TILE_DST) f32 VMEM scratch
    """
    s = pl.program_id(1)

    @pl.when(s == 0)
    def _():
        acc_ref[...] = jnp.zeros_like(acc_ref)

    # Leading-axis index only (well supported); lane/sublane dims stay whole.
    feat_blk = featT_ref[s] if feat_resident else featT_ref[0]   # (C_in, TILE_SRC)

    # Standard (C_in, TILE_SRC) @ (TILE_SRC, TILE_DST) bf16 matmul, f32 accumulate (MXU).
    acc_ref[...] += jnp.dot(feat_blk, adj_ref[...],
                            preferred_element_type=jnp.float32)

    @pl.when(s == pl.num_programs(1) - 1)
    def _():
        # agg^T scaled by in_degree(dst)^{-1/2}, then bf16 finalize matmul W^T @ agg^T.
        agg = (acc_ref[...] * dstn_ref[...]).astype(jnp.bfloat16)    # (C_in, TILE_DST)
        out = jnp.dot(wT_ref[...], agg, preferred_element_type=jnp.float32)
        outT_ref[...] = (out + b_ref[...]).astype(outT_ref.dtype)


def graph_conv_layer(adj, x, weight, bias):
    """GraphConvLayer forward.

    adj:    (N, N) dense adjacency, adj[src, dst] in {0, 1}
    x:      (N, C_in) node features
    weight: (C_in, C_out)
    bias:   (C_out,)
    returns (N, C_out) float32
    """
    n, c_in = x.shape
    c_out = weight.shape[1]

    n_pad, tile_dst, tile_src = _choose_tiling(n)
    n_dst_tiles = n_pad // tile_dst
    n_src_tiles = n_pad // tile_src
    c_in_pad = _round_up(c_in, LANE)
    c_out_pad = _round_up(c_out, LANE)

    # --- wrapper-side precompute -------------------------------------------
    # The only O(N^2) wrapper work is one fused read of adj (degree sums) and
    # the bf16 cast/pad; there is NO N x N transpose anymore.
    adj_f = adj.astype(jnp.float32)
    out_deg = jnp.maximum(adj_f.sum(axis=1), 1.0)            # (N,) src out-degree
    in_deg = jnp.maximum(adj_f.sum(axis=0), 1.0)             # (N,) dst in-degree
    src_norm = lax.rsqrt(out_deg)[:, None]                   # (N, 1)
    dst_norm = lax.rsqrt(in_deg)                             # (N,)

    adj_p = _pad2(adj_f, n_pad, n_pad).astype(jnp.bfloat16)  # [src, dst], {0,1} exact

    # Pre-normalized feat^T packed as (n_src_tiles, C_in, TILE_SRC); O(N*C_in) plumbing.
    feat = x.astype(jnp.float32) * src_norm                  # (N, C_in)
    feat_p = _pad2(feat, n_pad, c_in_pad)                    # (n_pad, C_in_pad)
    featT_p = (feat_p.T.reshape(c_in_pad, n_src_tiles, tile_src)
               .transpose(1, 0, 2).astype(jnp.bfloat16))     # (n_src_tiles, C_in_pad, TILE_SRC)

    dstn_p = jnp.pad(dst_norm, (0, n_pad - n), constant_values=1.0).reshape(1, n_pad)
    wT_p = _pad2(weight.astype(jnp.float32).T, c_out_pad, c_in_pad).astype(jnp.bfloat16)
    b_p = _pad2(bias.astype(jnp.float32).reshape(c_out, 1), c_out_pad, 1)

    # feat^T residency: DMA once and keep in VMEM (double-buffered by the
    # pipeline, hence the conservative per-copy budget); otherwise stream the
    # (C_in, TILE_SRC) slab per reduction step.
    feat_resident = featT_p.size * 2 <= FEAT_RESIDENT_BYTES
    if feat_resident:
        feat_spec = pl.BlockSpec((n_src_tiles, c_in_pad, tile_src),
                                 lambda d, s: (0, 0, 0))
    else:
        feat_spec = pl.BlockSpec((1, c_in_pad, tile_src), lambda d, s: (s, 0, 0))

    grid = (n_dst_tiles, n_src_tiles)

    feat_bytes = featT_p.size * 2 * (1 if feat_resident else n_dst_tiles)
    cost = pl.CostEstimate(
        flops=2 * n_pad * n_pad * c_in_pad + 2 * n_pad * c_in_pad * c_out_pad,
        transcendentals=0,
        bytes_accessed=(adj_p.size * 2            # adjacency streamed once, bf16
                        + feat_bytes              # feat^T (resident or re-streamed)
                        + dstn_p.size * 4
                        + wT_p.size * 2 + b_p.size * 4
                        + c_out_pad * n_pad * 4), # transposed output
    )

    outT_pad = pl.pallas_call(
        functools.partial(graph_conv_kernel, feat_resident=feat_resident),
        out_shape=jax.ShapeDtypeStruct((c_out_pad, n_pad), jnp.float32),
        grid_spec=pltpu.PrefetchScalarGridSpec(
            num_scalar_prefetch=0,
            grid=grid,
            in_specs=[
                feat_spec,                                                # feat^T slab(s)
                pl.BlockSpec((tile_src, tile_dst), lambda d, s: (s, d)),  # adj[src, dst]
                pl.BlockSpec((1, tile_dst), lambda d, s: (0, d)),         # dst norm
                pl.BlockSpec((c_out_pad, c_in_pad), lambda d, s: (0, 0)), # W^T (bf16)
                pl.BlockSpec((c_out_pad, 1), lambda d, s: (0, 0)),        # bias column
            ],
            out_specs=pl.BlockSpec((c_out_pad, tile_dst), lambda d, s: (0, d)),
            scratch_shapes=[pltpu.VMEM((c_in_pad, tile_dst), jnp.float32)],
        ),
        compiler_params=pltpu.CompilerParams(
            dimension_semantics=("parallel", "arbitrary"),
            vmem_limit_bytes=32 * 1024 * 1024,
        ),
        cost_estimate=cost,
    )(featT_p, adj_p, dstn_p, wT_p, b_p)

    # Un-transpose + trim: O(N * C_out) only.
    return outT_pad[:c_out, :n].T


def graph_conv_reference(adj, x, weight, bias):
    """Pure-JAX f32 reference (DGL GraphConv, norm='both')."""
    adj = adj.astype(jnp.float32)
    out_deg = jnp.maximum(adj.sum(axis=1, keepdims=True), 1.0)
    in_deg = jnp.maximum(adj.sum(axis=0, keepdims=True), 1.0)
    feat = x.astype(jnp.float32) * lax.rsqrt(out_deg)
    agg = adj.T @ feat
    agg = agg * lax.rsqrt(in_deg).T
    return agg @ weight.astype(jnp.float32) + bias.astype(jnp.float32)[None, :]


if __name__ == "__main__":
    key = jax.random.PRNGKey(0)
    k_adj, k_x, k_w = jax.random.split(key, 3)

    N = 256          # number of graph nodes
    C_IN = 16        # in_channels
    C_OUT = 8        # out_channels

    # Deterministic random directed graph (dense adjacency, no self-loops).
    adj = (jax.random.uniform(k_adj, (N, N)) < 0.05).astype(jnp.float32)
    adj = adj * (1.0 - jnp.eye(N, dtype=jnp.float32))

    # Node features.
    x = jax.random.normal(k_x, (N, C_IN), dtype=jnp.float32)

    # Parameters: xavier_uniform weight (C_in, C_out), zero bias (DGL defaults).
    limit = (6.0 / (C_IN + C_OUT)) ** 0.5
    weight = jax.random.uniform(k_w, (C_IN, C_OUT), minval=-limit, maxval=limit,
                                dtype=jnp.float32)
    bias = jnp.zeros((C_OUT,), dtype=jnp.float32)

    out = jax.block_until_ready(jax.jit(graph_conv_layer)(adj, x, weight, bias))
    ref = graph_conv_reference(adj, x, weight, bias)

    assert out.shape == (N, C_OUT)
    # bf16 streaming of adjacency (exact) + features/weights (quantized).
    assert jnp.allclose(out, ref, atol=2e-2, rtol=2e-2), "mismatch vs reference"

    print("KERNEL_OK")
</pallas_src>

<mosaic_0001>
module attributes {stable_mosaic.version = 11 : i64} {
  func.func @graph_conv_kernel(%arg0: i32, %arg1: i32, %arg2: memref<1x128x256xbf16, #tpu.memory_space<vmem>>, %arg3: memref<256x128xbf16, #tpu.memory_space<vmem>>, %arg4: memref<1x128xf32, #tpu.memory_space<vmem>>, %arg5: memref<128x128xbf16, #tpu.memory_space<vmem>>, %arg6: memref<128x1xf32, #tpu.memory_space<vmem>>, %arg7: memref<128x128xf32, #tpu.memory_space<vmem>>, %arg8: memref<128x128xf32, #tpu.memory_space<vmem>>) attributes {dimension_semantics = [#tpu.dimension_semantics<parallel>, #tpu.dimension_semantics<arbitrary>], iteration_bounds = array<i64: 2, 1>, scalar_prefetch = 0 : i64, scratch_operands = 1 : i64, tpu.core_type = #tpu.core_type<tc>, window_params = [{pipeline_mode = #tpu.pipeline_mode<synchronous>, transform_indices = @transform_0, window_bounds = array<i64: 1, 128, 256>}, {transform_indices = @transform_1, window_bounds = array<i64: 256, 128>}, {transform_indices = @transform_2, window_bounds = array<i64: 1, 128>}, {pipeline_mode = #tpu.pipeline_mode<synchronous>, transform_indices = @transform_3, window_bounds = array<i64: 128, 128>}, {pipeline_mode = #tpu.pipeline_mode<synchronous>, transform_indices = @transform_4, window_bounds = array<i64: 128, 1>}, {transform_indices = @transform_5, window_bounds = array<i64: 128, 128>}]} {
    %c0_i32 = arith.constant 0 : i32
    %0 = arith.cmpi eq, %arg1, %c0_i32 : i32
    %1 = arith.extui %0 : i1 to i32
    %c0_i32_0 = arith.constant 0 : i32
    %2 = arith.cmpi ne, %1, %c0_i32_0 : i32
    scf.if %2 {
      %cst_10 = arith.constant 0.000000e+00 : f32
      %14 = vector.broadcast %cst_10 : f32 to vector<128x128xf32>
      %c0_11 = arith.constant 0 : index
      %c0_12 = arith.constant 0 : index
      %15 = vector.load %arg8[%c0_11, %c0_12] : memref<128x128xf32, #tpu.memory_space<vmem>>, vector<128x128xf32>
      tpu.vector_store %arg8[%c0_11, %c0_12], %14 {strides = array<i32>} : memref<128x128xf32, #tpu.memory_space<vmem>>, vector<128x128xf32>,
    } else {
    }
    %3 = arith.index_cast %arg1 : i32 to index
    %c0 = arith.constant 0 : index
    %c0_1 = arith.constant 0 : index
    %4 = vector.load %arg2[%3, %c0, %c0_1] : memref<1x128x256xbf16, #tpu.memory_space<vmem>>, vector<1x128x256xbf16>
    %5 = vector.shape_cast %4 : vector<1x128x256xbf16> to vector<128x256xbf16>
    %c0_2 = arith.constant 0 : index
    %c0_3 = arith.constant 0 : index
    %6 = vector.load %arg8[%c0_2, %c0_3] : memref<128x128xf32, #tpu.memory_space<vmem>>, vector<128x128xf32>
    %c0_4 = arith.constant 0 : index
    %c0_5 = arith.constant 0 : index
    %7 = vector.load %arg3[%c0_4, %c0_5] : memref<256x128xbf16, #tpu.memory_space<vmem>>, vector<256x128xbf16>
    %cst = arith.constant dense<0.000000e+00> : vector<128x128xf32>
    %8 = tpu.matmul %5, %7, %cst {dimension_numbers = #tpu.dot_dimension_numbers<[1], [0], [0], [1], [0, 0, 1, 1], [], []>} : vector<128x256xbf16>, vector<256x128xbf16>, vector<128x128xf32> -> vector<128x128xf32>
    %9 = arith.addf %6, %8 : vector<128x128xf32>
    %c0_6 = arith.constant 0 : index
    %c0_7 = arith.constant 0 : index
    %10 = vector.load %arg8[%c0_6, %c0_7] : memref<128x128xf32, #tpu.memory_space<vmem>>, vector<128x128xf32>
    tpu.vector_store %arg8[%c0_6, %c0_7], %9 {strides = array<i32>} : memref<128x128xf32, #tpu.memory_space<vmem>>, vector<128x128xf32>,
    %c0_i32_8 = arith.constant 0 : i32
    %11 = arith.cmpi eq, %arg1, %c0_i32_8 : i32
    %12 = arith.extui %11 : i1 to i32
    %c0_i32_9 = arith.constant 0 : i32
    %13 = arith.cmpi ne, %12, %c0_i32_9 : i32
    scf.if %13 {
      %c0_10 = arith.constant 0 : index
      %c0_11 = arith.constant 0 : index
      %14 = vector.load %arg8[%c0_10, %c0_11] : memref<128x128xf32, #tpu.memory_space<vmem>>, vector<128x128xf32>
      %c0_12 = arith.constant 0 : index
      %c0_13 = arith.constant 0 : index
      %15 = vector.load %arg4[%c0_12, %c0_13] : memref<1x128xf32, #tpu.memory_space<vmem>>, vector<1x128xf32>
      %16 = vector.broadcast %15 : vector<1x128xf32> to vector<128x128xf32>
      %17 = arith.mulf %14, %16 : vector<128x128xf32>
      %18 = arith.truncf %17 : vector<128x128xf32> to vector<128x128xbf16>
      %c0_14 = arith.constant 0 : index
      %c0_15 = arith.constant 0 : index
      %19 = vector.load %arg5[%c0_14, %c0_15] : memref<128x128xbf16, #tpu.memory_space<vmem>>, vector<128x128xbf16>
      %cst_16 = arith.constant dense<0.000000e+00> : vector<128x128xf32>
      %20 = tpu.matmul %19, %18, %cst_16 {dimension_numbers = #tpu.dot_dimension_numbers<[1], [0], [0], [1], [0, 0, 1, 1], [], []>} : vector<128x128xbf16>, vector<128x128xbf16>, vector<128x128xf32> -> vector<128x128xf32>
      %c0_17 = arith.constant 0 : index
      %c0_18 = arith.constant 0 : index
      %21 = vector.load %arg6[%c0_17, %c0_18] : memref<128x1xf32, #tpu.memory_space<vmem>>, vector<128x1xf32>
      %22 = vector.broadcast %21 : vector<128x1xf32> to vector<128x128xf32>
      %23 = arith.addf %20, %22 : vector<128x128xf32>
      %c0_19 = arith.constant 0 : index
      %c0_20 = arith.constant 0 : index
      %24 = vector.load %arg7[%c0_19, %c0_20] : memref<128x128xf32, #tpu.memory_space<vmem>>, vector<128x128xf32>
      tpu.vector_store %arg7[%c0_19, %c0_20], %23 {strides = array<i32>} : memref<128x128xf32, #tpu.memory_space<vmem>>, vector<128x128xf32>,
    } else {
    }
    return
  }
  func.func @transform_0(%arg0: i32, %arg1: i32) -> (i32, i32, i32) {
    %c0_i32 = arith.constant 0 : i32
    %c0_i32_0 = arith.constant 0 : i32
    %c0_i32_1 = arith.constant 0 : i32
    %c0_i32_2 = arith.constant 0 : i32
    return %c0_i32, %c0_i32_0, %c0_i32_1 : i32, i32, i32
  }
  func.func @transform_1(%arg0: i32, %arg1: i32) -> (i32, i32) {
    %c0_i32 = arith.constant 0 : i32
    return %arg1, %arg0 : i32, i32
  }
  func.func @transform_2(%arg0: i32, %arg1: i32) -> (i32, i32) {
    %c0_i32 = arith.constant 0 : i32
    %c0_i32_0 = arith.constant 0 : i32
    return %c0_i32, %arg0 : i32, i32
  }
  func.func @transform_3(%arg0: i32, %arg1: i32) -> (i32, i32) {
    %c0_i32 = arith.constant 0 : i32
    %c0_i32_0 = arith.constant 0 : i32
    %c0_i32_1 = arith.constant 0 : i32
    return %c0_i32, %c0_i32_0 : i32, i32
  }
  func.func @transform_4(%arg0: i32, %arg1: i32) -> (i32, i32) {
    %c0_i32 = arith.constant 0 : i32
    %c0_i32_0 = arith.constant 0 : i32
    %c0_i32_1 = arith.constant 0 : i32
    return %c0_i32, %c0_i32_0 : i32, i32
  }
  func.func @transform_5(%arg0: i32, %arg1: i32) -> (i32, i32) {
    %c0_i32 = arith.constant 0 : i32
    %c0_i32_0 = arith.constant 0 : i32
    return %c0_i32, %arg0 : i32, i32
  }
}

</mosaic_0001>

<llo_original>
// kernel: graph_conv_layer.1
$region0: #{graph_conv_layer.1}
  #allocation0 [shape = 'u32[]', space=smem, size = 0x4, offset = 0x4, fixed_abs, tag = 'smem constant byte address 0x4 - core index']
  #allocation1 [shape = 'u32[72,128]{1,0:T(1,128)}', space=vmem, size = 0x9000, scoped, tag = 'internal scratch']
  #allocation2 [shape = 'f32[128,128]{1,0:T(8,128)}', space=vmem, size = 0x10000, scoped, tag = 'scratch operand']
  %s0 = inlined_call_operand.vmem [shape: bf16[1,128,256], index: 0, kind: input, shape index: {}]
  %s1 = inlined_call_operand.vmem [shape: bf16[256,256], index: 1, kind: input, shape index: {}]
  %s2 = inlined_call_operand.vmem [shape: f32[1,256], index: 2, kind: input, shape index: {}]
  %s3 = inlined_call_operand.vmem [shape: bf16[128,128], index: 3, kind: input, shape index: {}]
  %s4 = inlined_call_operand.vmem [shape: f32[128,1], index: 4, kind: input, shape index: {}]
  %s5 = inlined_call_operand.vmem [shape: f32[128,256], index: 5, kind: output, shape index: {}]
  %s6 = sld [smem:[#allocation0]]
  $region136: #{graph_conv_layer.1} parent=0
    _
  %s8 = ssub.s32 1, %s6
  %s9 = scalar_select 0, %s8, %s6
  $region1: #{graph_conv_layer.1} parent=0
    #allocation3 [shape = 'u8[131072]{0}', space=vmem, size = 0x20000, scoped, tag = 'input window, operand 1']
    #allocation4 [shape = 'u8[131072]{0}', space=vmem, size = 0x20000, scoped, tag = 'output window, operand 0']
    loop: start=0, step=1, limit=4
    $region2: #{graph_conv_layer.1} parent=1 // loop_pre_header
      _
    $region3: #{graph_conv_layer.1} parent=1 // loop_header
      %s11 = sphi 0, %s15
      %p12 = scmp.ge.s32.totalorder %s11, 4
      %s18 = sphi 0, %s30
      %s19 = sphi 0, %s26
      %s20 = sphi 0, %s18
      %s21 = sphi 0, %s19
      %s22 = sphi 0, %s20
      %s23 = sphi 0, %s21
      %s31 = sphi 0, %s31
      %s33 = sphi 0, %s31
      %s34 = sphi 0, %s33
      %s48 = sphi 0, %s34
      %s56 = sphi 0, %s58
      %s59 = sphi 0, %s56
      %s60 = sphi 0, %s59
      %s76 = sphi 0, %s60
      %s82 = sphi 0, %s84
      %s85 = sphi 0, %s82
      %s86 = sphi 0, %s85
      %s102 = sphi 0, %s86
      %s106 = sphi 0, %s106
      %s108 = sphi 0, %s106
      %s109 = sphi 0, %s108
      %s123 = sphi 0, %s109
      %s127 = sphi 0, %s127
      %s129 = sphi 0, %s127
      %s130 = sphi 0, %s129
      %s144 = sphi 0, %s130
      %s150 = sphi 0, %s152
      %s153 = sphi 0, %s150
      %s154 = sphi 0, %s153
      %s170 = sphi 0, %s154
    $region4: #{graph_conv_layer.1} parent=1 // loop_header_branch
      %14 = sbr.rel (%p12) target = $region8
    $region5: #{graph_conv_layer.1} parent=1 // loop_body
      %s16 = ssub.s32 %s11, 1
      %s17 = ssub.s32 %s11, 2
      %s24 = sadd.s32 1, %s19
      %p25 = scmp.ge.s32.totalorder %s24, 1
      %s26 = scalar_select %p25, 0, %s24
      %s27 = sadd.s32 1, %s18
      %s28 = scalar_select %p25, %s27, %s18
      %p29 = scmp.ge.s32.totalorder %s28, 2
      %s30 = scalar_select %p29, 0, %s28
      %s32 = sadd.s32 %s31, 1
      %p35 = scmp.eq.s32.totalorder %s11, 1
      %p36 = scmp.ne.s32.totalorder %s31, %s33
      %p37 = scmp.eq.s32.totalorder %s11, 0
      %p38 = por %p36, %p37
      %p39 = scmp.ne.s32.totalorder %s31, %s33
      %p40 = scmp.eq.s32.totalorder %s16, 1
      %p41 = por %p39, %p40
      %p42 = scmp.ne.s32.totalorder %s33, %s34
      %p43 = scmp.eq.s32.totalorder %s16, 0
      %p44 = por %p42, %p43
      %p45 = scmp.ne.s32.totalorder %s33, %s34
      %p46 = scmp.eq.s32.totalorder %s17, 1
      %p47 = por %p45, %p46
      %p49 = scmp.ne.s32.totalorder %s34, %s48
      %p50 = scmp.eq.s32.totalorder %s17, 0
      %p51 = por %p49, %p50
      %s52 = ssub.s32 %s19, %s26
      %s53 = ssub.s32 %s18, %s30
      %s54 = sor.u32 %s52, %s53
      %p55 = scmp.eq.s32.totalorder %s54, 0
      %s57 = sadd.s32 %s56, 1
      %s58 = scalar_select %p55, %s56, %s57
      %p61 = pneg %p55
      %p62 = scmp.eq.s32.totalorder %s11, 1
      %p63 = por %p61, %p62
      %p64 = scmp.ne.s32.totalorder %s56, %s59
      %p65 = scmp.eq.s32.totalorder %s11, 0
      %p66 = por %p64, %p65
      %p67 = scmp.ne.s32.totalorder %s56, %s59
      %p68 = scmp.eq.s32.totalorder %s16, 1
      %p69 = por %p67, %p68
      %p70 = scmp.ne.s32.totalorder %s59, %s60
      %p71 = scmp.eq.s32.totalorder %s16, 0
      %p72 = por %p70, %p71
      %p73 = scmp.ne.s32.totalorder %s59, %s60
      %p74 = scmp.eq.s32.totalorder %s17, 1
      %p75 = por %p73, %p74
      %p77 = scmp.ne.s32.totalorder %s60, %s76
      %p78 = scmp.eq.s32.totalorder %s17, 0
      %p79 = por %p77, %p78
      %s80 = ssub.s32 %s18, %s30
      %p81 = scmp.eq.s32.totalorder %s80, 0
      %s83 = sadd.s32 %s82, 1
      %s84 = scalar_select %p81, %s82, %s83
      %p87 = pneg %p81
      %p88 = scmp.eq.s32.totalorder %s11, 1
      %p89 = por %p87, %p88
      %p90 = scmp.ne.s32.totalorder %s82, %s85
      %p91 = scmp.eq.s32.totalorder %s11, 0
      %p92 = por %p90, %p91
      %p93 = scmp.ne.s32.totalorder %s82, %s85
      %p94 = scmp.eq.s32.totalorder %s16, 1
      %p95 = por %p93, %p94
      %p96 = scmp.ne.s32.totalorder %s85, %s86
      %p97 = scmp.eq.s32.totalorder %s16, 0
      %p98 = por %p96, %p97
      %p99 = scmp.ne.s32.totalorder %s85, %s86
      %p100 = scmp.eq.s32.totalorder %s17, 1
      %p101 = por %p99, %p100
      %p103 = scmp.ne.s32.totalorder %s86, %s102
      %p104 = scmp.eq.s32.totalorder %s17, 0
      %p105 = por %p103, %p104
      %s107 = sadd.s32 %s106, 1
      %p110 = scmp.eq.s32.totalorder %s11, 1
      %p111 = scmp.ne.s32.totalorder %s106, %s108
      %p112 = scmp.eq.s32.totalorder %s11, 0
      %p113 = por %p111, %p112
      %p114 = scmp.ne.s32.totalorder %s106, %s108
      %p115 = scmp.eq.s32.totalorder %s16, 1
      %p116 = por %p114, %p115
      %p117 = scmp.ne.s32.totalorder %s108, %s109
      %p118 = scmp.eq.s32.totalorder %s16, 0
      %p119 = por %p117, %p118
      %p120 = scmp.ne.s32.totalorder %s108, %s109
      %p121 = scmp.eq.s32.totalorder %s17, 1
      %p122 = por %p120, %p121
      %p124 = scmp.ne.s32.totalorder %s109, %s123
      %p125 = scmp.eq.s32.totalorder %s17, 0
      %p126 = por %p124, %p125
      %s128 = sadd.s32 %s127, 1
      %p131 = scmp.eq.s32.totalorder %s11, 1
      %p132 = scmp.ne.s32.totalorder %s127, %s129
      %p133 = scmp.eq.s32.totalorder %s11, 0
      %p134 = por %p132, %p133
      %p135 = scmp.ne.s32.totalorder %s127, %s129
      %p136 = scmp.eq.s32.totalorder %s16, 1
      %p137 = por %p135, %p136
      %p138 = scmp.ne.s32.totalorder %s129, %s130
      %p139 = scmp.eq.s32.totalorder %s16, 0
      %p140 = por %p138, %p139
      %p141 = scmp.ne.s32.totalorder %s129, %s130
      %p142 = scmp.eq.s32.totalorder %s17, 1
      %p143 = por %p141, %p142
      %p145 = scmp.ne.s32.totalorder %s130, %s144
      %p146 = scmp.eq.s32.totalorder %s17, 0
      %p147 = por %p145, %p146
      %s148 = ssub.s32 %s18, %s30
      %p149 = scmp.eq.s32.totalorder %s148, 0
      %s151 = sadd.s32 %s150, 1
      %s152 = scalar_select %p149, %s150, %s151
      %p155 = pneg %p149
      %p156 = scmp.eq.s32.totalorder %s11, 1
      %p157 = por %p155, %p156
      %p158 = scmp.ne.s32.totalorder %s150, %s153
      %p159 = scmp.eq.s32.totalorder %s11, 0
      %p160 = por %p158, %p159
      %p161 = scmp.ne.s32.totalorder %s150, %s153
      %p162 = scmp.eq.s32.totalorder %s16, 1
      %p163 = por %p161, %p162
      %p164 = scmp.ne.s32.totalorder %s153, %s154
      %p165 = scmp.eq.s32.totalorder %s16, 0
      %p166 = por %p164, %p165
      %p167 = scmp.ne.s32.totalorder %s153, %s154
      %p168 = scmp.eq.s32.totalorder %s17, 1
      %p169 = por %p167, %p168
      %p171 = scmp.ne.s32.totalorder %s154, %s170
      %p172 = scmp.eq.s32.totalorder %s17, 0
      %p173 = por %p171, %p172
      %p174 = scmp.le.s32.totalorder 1, %s11
      %p175 = scmp.lt.s32.totalorder %s11, 3
      %p176 = pnand %p174, %p175
      %p177 = pneg %p176
      // Predicated region
      $region9: #{graph_conv_layer.1} parent=5 // pred_check
        _
      $region10: #{graph_conv_layer.1} parent=5 // pred_check_branch
        %179 = sbr.rel (%p176) target = $region12
      $region11: #{graph_conv_layer.1} parent=5 // pred_region
        %s180 = ssub.s32 %s11, 1
        // Predicated region
        $region13: #{graph_conv_layer.1} parent=11 // pred_check
          %p181 = pneg %p44
        $region14: #{graph_conv_layer.1} parent=11 // pred_check_branch
          %183 = sbr.rel (%p181) target = $region16
        $region15: #{graph_conv_layer.1} parent=11 // pred_region
          _
        $region16: #{graph_conv_layer.1} parent=11 // pred_fallthru
          _
        // Predicated region
        $region17: #{graph_conv_layer.1} parent=11 // pred_check
          %p184 = pneg %p119
        $region18: #{graph_conv_layer.1} parent=11 // pred_check_branch
          %186 = sbr.rel (%p184) target = $region20
        $region19: #{graph_conv_layer.1} parent=11 // pred_region
          _
        $region20: #{graph_conv_layer.1} parent=11 // pred_fallthru
          _
        // Predicated region
        $region21: #{graph_conv_layer.1} parent=11 // pred_check
          %p187 = pneg %p140
        $region22: #{graph_conv_layer.1} parent=11 // pred_check_branch
          %189 = sbr.rel (%p187) target = $region24
        $region23: #{graph_conv_layer.1} parent=11 // pred_region
          _
        $region24: #{graph_conv_layer.1} parent=11 // pred_fallthru
          _
      $region12: #{graph_conv_layer.1} parent=5 // pred_fallthru
        _
      %p190 = scmp.lt.s32.totalorder %s11, 2
      // Predicated region
      $region25: #{graph_conv_layer.1} parent=5 // pred_check
        %p191 = pneg %p190
      $region26: #{graph_conv_layer.1} parent=5 // pred_check_branch
        %193 = sbr.rel (%p191) target = $region28
      $region27: #{graph_conv_layer.1} parent=5 // pred_region
        // Predicated region
        $region29: #{graph_conv_layer.1} parent=27 // pred_check
          %p194 = pneg %p66
        $region30: #{graph_conv_layer.1} parent=27 // pred_check_branch
          %196 = sbr.rel (%p194) target = $region32
        $region31: #{graph_conv_layer.1} parent=27 // pred_region
          %s197 = sand.u32 %s56, 1
          %s198 = sand.u32 %s56, 1
          %s199 = smul.addr %s198, 128
          %s200 = scalar_lea.vmem [#allocation3], %s199
          %s201 = smul.u32 32, %s19
          %s202 = smul.addr %s201, 2
          %s203 = sadd.s32 %s18, %s202
          %s204 = smul.addr %s203, 4
          %s205 = scalar_lea.vmem %s1, %s204
          // Predicated region
          $region33: #{graph_conv_layer.1} parent=31 // pred_check
            _
          $region34: #{graph_conv_layer.1} parent=31 // pred_check_branch
            %207 = sbr.rel (0) target = $region36
          $region35: #{graph_conv_layer.1} parent=31 // pred_region
            // Predicated region
            $region37: #{graph_conv_layer.1} parent=35 // pred_check
              _
            $region38: #{graph_conv_layer.1} parent=35 // pred_check_branch
              %209 = sbr.rel target = $region40
            $region39: #{graph_conv_layer.1} parent=35 // pred_region
              // Predicated region
              $region52: #{graph_conv_layer.1} parent=39 // pred_check
                _
              $region53: #{graph_conv_layer.1} parent=39 // pred_check_branch
                %287 = sbr.rel (0) target = $region55
              $region54: #{graph_conv_layer.1} parent=39 // pred_region
                loop: start=0, step=1, limit=1
                $region56: #{graph_conv_layer.1} parent=54 // loop_pre_header
                  _
                $region57: #{graph_conv_layer.1} parent=54 // loop_header
                  %s289 = sphi 0, %s293
                  %p290 = scmp.ge.s32.totalorder %s289, 1
                  %s294 = sphi %s205, %s205
                  %s295 = sphi %s200, %s200
                $region58: #{graph_conv_layer.1} parent=54 // loop_header_branch
                  %292 = sbr.rel (%p290) target = $region62
                $region59: #{graph_conv_layer.1} parent=54 // loop_body
                  _
                $region60: #{graph_conv_layer.1} parent=54 // loop_footer
                  %s293 = sadd.s32 1, %s289
                $region61: #{graph_conv_layer.1} parent=54 // loop_footer_branch
                  %288 = sbr.rel target = $region57
                $region62: #{graph_conv_layer.1} parent=54 // loop_exit
                  _
                %s297 = ssub.s32 16, 1
                loop: start=0, step=1, limit=1
                $region63: #{graph_conv_layer.1} parent=54 // loop_pre_header
                  _
                $region64: #{graph_conv_layer.1} parent=54 // loop_header
                  %s299 = sphi 0, %s303
                  %p300 = scmp.ge.s32.totalorder %s299, 1
                  %s304 = sphi %s205, %s205
                  %s305 = sphi %s200, %s200
                $region65: #{graph_conv_layer.1} parent=54 // loop_header_branch
                  %302 = sbr.rel (%p300) target = $region69
                $region66: #{graph_conv_layer.1} parent=54 // loop_body
                  %v306 = vld [vmem:[%s304] sm:%s297]
                  %307 = vst [vmem:[%s305] sm:%s297] %v306
                  %v308 = vld [vmem:[%s304 + $0x8] sm:%s297]
                  %309 = vst [vmem:[%s305 + $0x4] sm:%s297] %v308
                  %v310 = vld [vmem:[%s304 + $0x10] sm:%s297]
                  %311 = vst [vmem:[%s305 + $0x8] sm:%s297] %v310
                  %v312 = vld [vmem:[%s304 + $0x18] sm:%s297]
                  %313 = vst [vmem:[%s305 + $0xc] sm:%s297] %v312
                  %v314 = vld [vmem:[%s304 + $0x20] sm:%s297]
                  %315 = vst [vmem:[%s305 + $0x10] sm:%s297] %v314
                  %v316 = vld [vmem:[%s304 + $0x28] sm:%s297]
                  %317 = vst [vmem:[%s305 + $0x14] sm:%s297] %v316
                  %v318 = vld [vmem:[%s304 + $0x30] sm:%s297]
                  %319 = vst [vmem:[%s305 + $0x18] sm:%s297] %v318
                  %v320 = vld [vmem:[%s304 + $0x38] sm:%s297]
                  %321 = vst [vmem:[%s305 + $0x1c] sm:%s297] %v320
                  %v322 = vld [vmem:[%s304 + $0x40] sm:%s297]
                  %323 = vst [vmem:[%s305 + $0x20] sm:%s297] %v322
                  %v324 = vld [vmem:[%s304 + $0x48] sm:%s297]
                  %325 = vst [vmem:[%s305 + $0x24] sm:%s297] %v324
                  %v326 = vld [vmem:[%s304 + $0x50] sm:%s297]
                  %327 = vst [vmem:[%s305 + $0x28] sm:%s297] %v326
                  %v328 = vld [vmem:[%s304 + $0x58] sm:%s297]
                  %329 = vst [vmem:[%s305 + $0x2c] sm:%s297] %v328
                  %v330 = vld [vmem:[%s304 + $0x60] sm:%s297]
                  %331 = vst [vmem:[%s305 + $0x30] sm:%s297] %v330
                  %v332 = vld [vmem:[%s304 + $0x68] sm:%s297]
                  %333 = vst [vmem:[%s305 + $0x34] sm:%s297] %v332
                  %v334 = vld [vmem:[%s304 + $0x70] sm:%s297]
                  %335 = vst [vmem:[%s305 + $0x38] sm:%s297] %v334
                  %v336 = vld [vmem:[%s304 + $0x78] sm:%s297]
                  %337 = vst [vmem:[%s305 + $0x3c] sm:%s297] %v336
                  %v338 = vld [vmem:[%s304 + $0x80] sm:%s297]
                  %339 = vst [vmem:[%s305 + $0x40] sm:%s297] %v338
                  %v340 = vld [vmem:[%s304 + $0x88] sm:%s297]
                  %341 = vst [vmem:[%s305 + $0x44] sm:%s297] %v340
                  %v342 = vld [vmem:[%s304 + $0x90] sm:%s297]
                  %343 = vst [vmem:[%s305 + $0x48] sm:%s297] %v342
                  %v344 = vld [vmem:[%s304 + $0x98] sm:%s297]
                  %345 = vst [vmem:[%s305 + $0x4c] sm:%s297] %v344
                  %v346 = vld [vmem:[%s304 + $0xa0] sm:%s297]
                  %347 = vst [vmem:[%s305 + $0x50] sm:%s297] %v346
                  %v348 = vld [vmem:[%s304 + $0xa8] sm:%s297]
                  %349 = vst [vmem:[%s305 + $0x54] sm:%s297] %v348
                  %v350 = vld [vmem:[%s304 + $0xb0] sm:%s297]
                  %351 = vst [vmem:[%s305 + $0x58] sm:%s297] %v350
                  %v352 = vld [vmem:[%s304 + $0xb8] sm:%s297]
                  %353 = vst [vmem:[%s305 + $0x5c] sm:%s297] %v352
                  %v354 = vld [vmem:[%s304 + $0xc0] sm:%s297]
                  %355 = vst [vmem:[%s305 + $0x60] sm:%s297] %v354
                  %v356 = vld [vmem:[%s304 + $0xc8] sm:%s297]
                  %357 = vst [vmem:[%s305 + $0x64] sm:%s297] %v356
                  %v358 = vld [vmem:[%s304 + $0xd0] sm:%s297]
                  %359 = vst [vmem:[%s305 + $0x68] sm:%s297] %v358
                  %v360 = vld [vmem:[%s304 + $0xd8] sm:%s297]
                  %361 = vst [vmem:[%s305 + $0x6c] sm:%s297] %v360
                  %v362 = vld [vmem:[%s304 + $0xe0] sm:%s297]
                  %363 = vst [vmem:[%s305 + $0x70] sm:%s297] %v362
                  %v364 = vld [vmem:[%s304 + $0xe8] sm:%s297]
                  %365 = vst [vmem:[%s305 + $0x74] sm:%s297] %v364
                  %v366 = vld [vmem:[%s304 + $0xf0] sm:%s297]
                  %367 = vst [vmem:[%s305 + $0x78] sm:%s297] %v366
                  %v368 = vld [vmem:[%s304 + $0xf8] sm:%s297]
                  %369 = vst [vmem:[%s305 + $0x7c] sm:%s297] %v368
                $region67: #{graph_conv_layer.1} parent=54 // loop_footer
                  %s303 = sadd.s32 1, %s299
                $region68: #{graph_conv_layer.1} parent=54 // loop_footer_branch
                  %298 = sbr.rel target = $region64
                $region69: #{graph_conv_layer.1} parent=54 // loop_exit
                  _
              $region55: #{graph_conv_layer.1} parent=39 // pred_fallthru
                _
            $region40: #{graph_conv_layer.1} parent=35 // pred_fallthru
              _
            // Predicated region
            $region41: #{graph_conv_layer.1} parent=35 // pred_check
              _
            $region42: #{graph_conv_layer.1} parent=35 // pred_check_branch
              %211 = sbr.rel (0) target = $region44
            $region43: #{graph_conv_layer.1} parent=35 // pred_region
              %s213 = ssub.s32 16, 1
              loop: start=0, step=1, limit=1
              $region45: #{graph_conv_layer.1} parent=43 // loop_pre_header
                _
              $region46: #{graph_conv_layer.1} parent=43 // loop_header
                %s215 = sphi 0, %s219
                %p216 = scmp.ge.s32.totalorder %s215, 1
                %s220 = sphi %s205, %s205
                %s221 = sphi %s200, %s200
              $region47: #{graph_conv_layer.1} parent=43 // loop_header_branch
                %218 = sbr.rel (%p216) target = $region51
              $region48: #{graph_conv_layer.1} parent=43 // loop_body
                %v222 = vld [vmem:[%s220] sm:%s213]
                %223 = vst [vmem:[%s221] sm:%s213] %v222
                %v224 = vld [vmem:[%s220 + $0x8] sm:%s213]
                %225 = vst [vmem:[%s221 + $0x4] sm:%s213] %v224
                %v226 = vld [vmem:[%s220 + $0x10] sm:%s213]
                %227 = vst [vmem:[%s221 + $0x8] sm:%s213] %v226
                %v228 = vld [vmem:[%s220 + $0x18] sm:%s213]
                %229 = vst [vmem:[%s221 + $0xc] sm:%s213] %v228
                %v230 = vld [vmem:[%s220 + $0x20] sm:%s213]
                %231 = vst [vmem:[%s221 + $0x10] sm:%s213] %v230
                %v232 = vld [vmem:[%s220 + $0x28] sm:%s213]
                %233 = vst [vmem:[%s221 + $0x14] sm:%s213] %v232
                %v234 = vld [vmem:[%s220 + $0x30] sm:%s213]
                %235 = vst [vmem:[%s221 + $0x18] sm:%s213] %v234
                %v236 = vld [vmem:[%s220 + $0x38] sm:%s213]
                %237 = vst [vmem:[%s221 + $0x1c] sm:%s213] %v236
                %v238 = vld [vmem:[%s220 + $0x40] sm:%s213]
                %239 = vst [vmem:[%s221 + $0x20] sm:%s213] %v238
                %v240 = vld [vmem:[%s220 + $0x48] sm:%s213]
                %241 = vst [vmem:[%s221 + $0x24] sm:%s213] %v240
                %v242 = vld [vmem:[%s220 + $0x50] sm:%s213]
                %243 = vst [vmem:[%s221 + $0x28] sm:%s213] %v242
                %v244 = vld [vmem:[%s220 + $0x58] sm:%s213]
                %245 = vst [vmem:[%s221 + $0x2c] sm:%s213] %v244
                %v246 = vld [vmem:[%s220 + $0x60] sm:%s213]
                %247 = vst [vmem:[%s221 + $0x30] sm:%s213] %v246
                %v248 = vld [vmem:[%s220 + $0x68] sm:%s213]
                %249 = vst [vmem:[%s221 + $0x34] sm:%s213] %v248
                %v250 = vld [vmem:[%s220 + $0x70] sm:%s213]
                %251 = vst [vmem:[%s221 + $0x38] sm:%s213] %v250
                %v252 = vld [vmem:[%s220 + $0x78] sm:%s213]
                %253 = vst [vmem:[%s221 + $0x3c] sm:%s213] %v252
                %v254 = vld [vmem:[%s220 + $0x80] sm:%s213]
                %255 = vst [vmem:[%s221 + $0x40] sm:%s213] %v254
                %v256 = vld [vmem:[%s220 + $0x88] sm:%s213]
                %257 = vst [vmem:[%s221 + $0x44] sm:%s213] %v256
                %v258 = vld [vmem:[%s220 + $0x90] sm:%s213]
                %259 = vst [vmem:[%s221 + $0x48] sm:%s213] %v258
                %v260 = vld [vmem:[%s220 + $0x98] sm:%s213]
                %261 = vst [vmem:[%s221 + $0x4c] sm:%s213] %v260
                %v262 = vld [vmem:[%s220 + $0xa0] sm:%s213]
                %263 = vst [vmem:[%s221 + $0x50] sm:%s213] %v262
                %v264 = vld [vmem:[%s220 + $0xa8] sm:%s213]
                %265 = vst [vmem:[%s221 + $0x54] sm:%s213] %v264
                %v266 = vld [vmem:[%s220 + $0xb0] sm:%s213]
                %267 = vst [vmem:[%s221 + $0x58] sm:%s213] %v266
                %v268 = vld [vmem:[%s220 + $0xb8] sm:%s213]
                %269 = vst [vmem:[%s221 + $0x5c] sm:%s213] %v268
                %v270 = vld [vmem:[%s220 + $0xc0] sm:%s213]
                %271 = vst [vmem:[%s221 + $0x60] sm:%s213] %v270
                %v272 = vld [vmem:[%s220 + $0xc8] sm:%s213]
                %273 = vst [vmem:[%s221 + $0x64] sm:%s213] %v272
                %v274 = vld [vmem:[%s220 + $0xd0] sm:%s213]
                %275 = vst [vmem:[%s221 + $0x68] sm:%s213] %v274
                %v276 = vld [vmem:[%s220 + $0xd8] sm:%s213]
                %277 = vst [vmem:[%s221 + $0x6c] sm:%s213] %v276
                %v278 = vld [vmem:[%s220 + $0xe0] sm:%s213]
                %279 = vst [vmem:[%s221 + $0x70] sm:%s213] %v278
                %v280 = vld [vmem:[%s220 + $0xe8] sm:%s213]
                %281 = vst [vmem:[%s221 + $0x74] sm:%s213] %v280
                %v282 = vld [vmem:[%s220 + $0xf0] sm:%s213]
                %283 = vst [vmem:[%s221 + $0x78] sm:%s213] %v282
                %v284 = vld [vmem:[%s220 + $0xf8] sm:%s213]
                %285 = vst [vmem:[%s221 + $0x7c] sm:%s213] %v284
              $region49: #{graph_conv_layer.1} parent=43 // loop_footer
                %s219 = sadd.s32 1, %s215
              $region50: #{graph_conv_layer.1} parent=43 // loop_footer_branch
                %214 = sbr.rel target = $region46
              $region51: #{graph_conv_layer.1} parent=43 // loop_exit
                _
            $region44: #{graph_conv_layer.1} parent=35 // pred_fallthru
              _
          $region36: #{graph_conv_layer.1} parent=31 // pred_fallthru
            _
          %370 = vnop
        $region32: #{graph_conv_layer.1} parent=27 // pred_fallthru
          _
        // Predicated region
        $region70: #{graph_conv_layer.1} parent=27 // pred_check
          %p371 = pneg %p92
        $region71: #{graph_conv_layer.1} parent=27 // pred_check_branch
          %373 = sbr.rel (%p371) target = $region73
        $region72: #{graph_conv_layer.1} parent=27 // pred_region
          %p374 = scmp.lt.s32.totalorder %s18, 1
          %s375 = scalar_select %p374, %s18, 1
          %s376 = scalar_lea.vmem %s2, %s375
        $region73: #{graph_conv_layer.1} parent=27 // pred_fallthru
          _
      $region28: #{graph_conv_layer.1} parent=5 // pred_fallthru
        _
      %p377 = scmp.le.s32.totalorder 1, %s11
      %p378 = scmp.lt.s32.totalorder %s11, 3
      %p379 = pnand %p377, %p378
      %p380 = pneg %p379
      // Predicated region
      $region74: #{graph_conv_layer.1} parent=5 // pred_check
        _
      $region75: #{graph_conv_layer.1} parent=5 // pred_check_branch
        %382 = sbr.rel (%p379) target = $region77
      $region76: #{graph_conv_layer.1} parent=5 // pred_region
        %s383 = ssub.s32 %s11, 1
        %s384 = sand.u32 %s59, 1
        %s385 = sand.u32 %s59, 1
        %s386 = smul.addr %s385, 128
        %s387 = scalar_lea.vmem [#allocation3], %s386
        // Predicated region
        $region78: #{graph_conv_layer.1} parent=76 // pred_check
          %p388 = pneg %p72
        $region79: #{graph_conv_layer.1} parent=76 // pred_check_branch
          %390 = sbr.rel (%p388) target = $region81
        $region80: #{graph_conv_layer.1} parent=76 // pred_region
          _
        $region81: #{graph_conv_layer.1} parent=76 // pred_fallthru
          _
        %p391 = pneg %p44
        %p392 = pneg %p41
        %s393 = sand.u32 %s59, 1
        %s394 = sand.u32 %s59, 1
        %s395 = smul.addr %s394, 128
        %s396 = scalar_lea.vmem [#allocation3], %s395
        %p397 = pneg %p72
        %p398 = pneg %p69
        %p399 = scmp.lt.s32.totalorder %s20, 1
        %s400 = scalar_select %p399, %s20, 1
        %s401 = scalar_lea.vmem %s2, %s400
        %p402 = pneg %p98
        %p403 = pneg %p95
        %p404 = pneg %p119
        %p405 = pneg %p116
        %p406 = pneg %p140
        %p407 = pneg %p137
        %p408 = pneg %p166
        %p409 = pneg %p163
        %s410 = sand.u32 %s153, 1
        %s411 = sand.u32 %s153, 1
        %s412 = smul.addr %s411, 128
        %s413 = scalar_lea.vmem [#allocation4], %s412
        %s414 = smul.u32 32, %s21
        %p415 = scmp.lt.s32.totalorder %s20, 1
        %s416 = scalar_select %p415, %s20, 1
        %s417 = scalar_lea.vmem %s2, %s416
        %p418 = scmp.eq.s32.totalorder %s21, 0
        // Predicated region
        $region82: #{graph_conv_layer.1} parent=76 // pred_check
          %p419 = pneg %p418
        $region83: #{graph_conv_layer.1} parent=76 // pred_check_branch
          %421 = sbr.rel (%p419) target = $region85
        $region84: #{graph_conv_layer.1} parent=76 // pred_region
          %422 = vst [vmem:[#allocation2] sm:$0xff] 0.0
          %423 = vst [vmem:[#allocation2 + $0x8] sm:$0xff] 0.0
          %424 = vst [vmem:[#allocation2 + $0x10] sm:$0xff] 0.0
          %425 = vst [vmem:[#allocation2 + $0x18] sm:$0xff] 0.0
          %426 = vst [vmem:[#allocation2 + $0x20] sm:$0xff] 0.0
          %427 = vst [vmem:[#allocation2 + $0x28] sm:$0xff] 0.0
          %428 = vst [vmem:[#allocation2 + $0x30] sm:$0xff] 0.0
          %429 = vst [vmem:[#allocation2 + $0x38] sm:$0xff] 0.0
          %430 = vst [vmem:[#allocation2 + $0x40] sm:$0xff] 0.0
          %431 = vst [vmem:[#allocation2 + $0x48] sm:$0xff] 0.0
          %432 = vst [vmem:[#allocation2 + $0x50] sm:$0xff] 0.0
          %433 = vst [vmem:[#allocation2 + $0x58] sm:$0xff] 0.0
          %434 = vst [vmem:[#allocation2 + $0x60] sm:$0xff] 0.0
          %435 = vst [vmem:[#allocation2 + $0x68] sm:$0xff] 0.0
          %436 = vst [vmem:[#allocation2 + $0x70] sm:$0xff] 0.0
          %437 = vst [vmem:[#allocation2 + $0x78] sm:$0xff] 0.0
        $region85: #{graph_conv_layer.1} parent=76 // pred_fallthru
          _
        %s438 = smul.u32 %s21, 32
        %s439 = smul.addr %s438, 4
        %s440 = scalar_lea.vmem %s0, %s439
        %v441 = vld [vmem:[%s440] sm:$0xff]
        %v442 = vld [vmem:[%s440 + $0x8] sm:$0xff]
        %v443 = vld [vmem:[%s440 + $0x10] sm:$0xff]
        %v444 = vld [vmem:[%s440 + $0x18] sm:$0xff]
        %v445 = vld [vmem:[%s440 + $0x20] sm:$0xff]
        %v446 = vld [vmem:[%s440 + $0x28] sm:$0xff]
        %v447 = vld [vmem:[%s440 + $0x30] sm:$0xff]
        %v448 = vld [vmem:[%s440 + $0x38] sm:$0xff]
        %v449 = vld [vmem:[%s440 + $0x40] sm:$0xff]
        %v450 = vld [vmem:[%s440 + $0x48] sm:$0xff]
        %v451 = vld [vmem:[%s440 + $0x50] sm:$0xff]
        %v452 = vld [vmem:[%s440 + $0x58] sm:$0xff]
        %v453 = vld [vmem:[%s440 + $0x60] sm:$0xff]
        %v454 = vld [vmem:[%s440 + $0x68] sm:$0xff]
        %v455 = vld [vmem:[%s440 + $0x70] sm:$0xff]
        %v456 = vld [vmem:[%s440 + $0x78] sm:$0xff]
        %v457 = vld [vmem:[#allocation2] sm:$0xff]
        %v458 = vld [vmem:[#allocation2 + $0x8] sm:$0xff]
        %v459 = vld [vmem:[#allocation2 + $0x10] sm:$0xff]
        %v460 = vld [vmem:[#allocation2 + $0x18] sm:$0xff]
        %v461 = vld [vmem:[#allocation2 + $0x20] sm:$0xff]
        %v462 = vld [vmem:[#allocation2 + $0x28] sm:$0xff]
        %v463 = vld [vmem:[#allocation2 + $0x30] sm:$0xff]
        %v464 = vld [vmem:[#allocation2 + $0x38] sm:$0xff]
        %v465 = vld [vmem:[#allocation2 + $0x40] sm:$0xff]
        %v466 = vld [vmem:[#allocation2 + $0x48] sm:$0xff]
        %v467 = vld [vmem:[#allocation2 + $0x50] sm:$0xff]
        %v468 = vld [vmem:[#allocation2 + $0x58] sm:$0xff]
        %v469 = vld [vmem:[#allocation2 + $0x60] sm:$0xff]
        %v470 = vld [vmem:[#allocation2 + $0x68] sm:$0xff]
        %v471 = vld [vmem:[#allocation2 + $0x70] sm:$0xff]
        %v472 = vld [vmem:[#allocation2 + $0x78] sm:$0xff]
        %v473 = vld [vmem:[%s387] sm:$0xf]
        %v474 = vld [vmem:[%s387 + $0x4] sm:$0xf]
        %v475 = vld [vmem:[%s387 + $0x8] sm:$0xf]
        %v476 = vld [vmem:[%s387 + $0xc] sm:$0xf]
        %v477 = vld [vmem:[%s387 + $0x10] sm:$0xf]
        %v478 = vld [vmem:[%s387 + $0x14] sm:$0xf]
        %v479 = vld [vmem:[%s387 + $0x18] sm:$0xf]
        %v480 = vld [vmem:[%s387 + $0x1c] sm:$0xf]
        %v481 = vld [vmem:[%s387 + $0x20] sm:$0xf]
        %v482 = vld [vmem:[%s387 + $0x24] sm:$0xf]
        %v483 = vld [vmem:[%s387 + $0x28] sm:$0xf]
        %v484 = vld [vmem:[%s387 + $0x2c] sm:$0xf]
        %v485 = vld [vmem:[%s387 + $0x30] sm:$0xf]
        %v486 = vld [vmem:[%s387 + $0x34] sm:$0xf]
        %v487 = vld [vmem:[%s387 + $0x38] sm:$0xf]
        %v488 = vld [vmem:[%s387 + $0x3c] sm:$0xf]
        %v489 = vld [vmem:[%s387 + $0x40] sm:$0xf]
        %v490 = vld [vmem:[%s387 + $0x44] sm:$0xf]
        %v491 = vld [vmem:[%s387 + $0x48] sm:$0xf]
        %v492 = vld [vmem:[%s387 + $0x4c] sm:$0xf]
        %v493 = vld [vmem:[%s387 + $0x50] sm:$0xf]
        %v494 = vld [vmem:[%s387 + $0x54] sm:$0xf]
        %v495 = vld [vmem:[%s387 + $0x58] sm:$0xf]
        %v496 = vld [vmem:[%s387 + $0x5c] sm:$0xf]
        %v497 = vld [vmem:[%s387 + $0x60] sm:$0xf]
        %v498 = vld [vmem:[%s387 + $0x64] sm:$0xf]
        %v499 = vld [vmem:[%s387 + $0x68] sm:$0xf]
        %v500 = vld [vmem:[%s387 + $0x6c] sm:$0xf]
        %v501 = vld [vmem:[%s387 + $0x70] sm:$0xf]
        %v502 = vld [vmem:[%s387 + $0x74] sm:$0xf]
        %v503 = vld [vmem:[%s387 + $0x78] sm:$0xf]
        %v504 = vld [vmem:[%s387 + $0x7c] sm:$0xf]
        %v521 = vunpack.c.l.b16 %v441
        %v522 = vunpack.c.h.b16 %v441
        %v523 = vunpack.c.l.b16 %v442
        %v524 = vunpack.c.h.b16 %v442
        %v525 = vunpack.c.l.b16 %v443
        %v526 = vunpack.c.h.b16 %v443
        %v527 = vunpack.c.l.b16 %v444
        %v528 = vunpack.c.h.b16 %v444
        %v529 = vunpack.c.l.b16 %v445
        %v530 = vunpack.c.h.b16 %v445
        %v531 = vunpack.c.l.b16 %v446
        %v532 = vunpack.c.h.b16 %v446
        %v533 = vunpack.c.l.b16 %v447
        %v534 = vunpack.c.h.b16 %v447
        %v535 = vunpack.c.l.b16 %v448
        %v536 = vunpack.c.h.b16 %v448
        %v537 = vunpack.c.l.b16 %v449
        %v538 = vunpack.c.h.b16 %v449
        %v539 = vunpack.c.l.b16 %v450
        %v540 = vunpack.c.h.b16 %v450
        %v541 = vunpack.c.l.b16 %v451
        %v542 = vunpack.c.h.b16 %v451
        %v543 = vunpack.c.l.b16 %v452
        %v544 = vunpack.c.h.b16 %v452
        %v545 = vunpack.c.l.b16 %v453
        %v546 = vunpack.c.h.b16 %v453
        %v547 = vunpack.c.l.b16 %v454
        %v548 = vunpack.c.h.b16 %v454
        %v549 = vunpack.c.l.b16 %v455
        %v550 = vunpack.c.h.b16 %v455
        %v551 = vunpack.c.l.b16 %v456
        %v552 = vunpack.c.h.b16 %v456
        %v553 = vpack.c.b16 %v523, %v521
        %v554 = vpack.c.b16 %v524, %v522
        %v555 = vpack.c.b16 %v527, %v525
        %v556 = vpack.c.b16 %v528, %v526
        %v557 = vpack.c.b16 %v531, %v529
        %v558 = vpack.c.b16 %v532, %v530
        %v559 = vpack.c.b16 %v535, %v533
        %v560 = vpack.c.b16 %v536, %v534
        %v561 = vpack.c.b16 %v539, %v537
        %v562 = vpack.c.b16 %v540, %v538
        %v563 = vpack.c.b16 %v543, %v541
        %v564 = vpack.c.b16 %v544, %v542
        %v565 = vpack.c.b16 %v547, %v545
        %v566 = vpack.c.b16 %v548, %v546
        %v567 = vpack.c.b16 %v551, %v549
        %v568 = vpack.c.b16 %v552, %v550
        %v617 = vunpack.c.l.b16 %v473
        %v618 = vunpack.c.l.b16 %v474
        %v619 = vunpack.c.l.b16 %v475
        %v620 = vunpack.c.l.b16 %v476
        %v621 = vunpack.c.l.b16 %v477
        %v622 = vunpack.c.l.b16 %v478
        %v623 = vunpack.c.l.b16 %v479
        %v624 = vunpack.c.l.b16 %v480
        %v625 = vunpack.c.l.b16 %v481
        %v626 = vunpack.c.l.b16 %v482
        %v627 = vunpack.c.l.b16 %v483
        %v628 = vunpack.c.l.b16 %v484
        %v629 = vunpack.c.l.b16 %v485
        %v630 = vunpack.c.l.b16 %v486
        %v631 = vunpack.c.l.b16 %v487
        %v632 = vunpack.c.l.b16 %v488
        %v633 = vunpack.c.l.b16 %v489
        %v634 = vunpack.c.l.b16 %v490
        %v635 = vunpack.c.l.b16 %v491
        %v636 = vunpack.c.l.b16 %v492
        %v637 = vunpack.c.l.b16 %v493
        %v638 = vunpack.c.l.b16 %v494
        %v639 = vunpack.c.l.b16 %v495
        %v640 = vunpack.c.l.b16 %v496
        %v641 = vunpack.c.l.b16 %v497
        %v642 = vunpack.c.l.b16 %v498
        %v643 = vunpack.c.l.b16 %v499
        %v644 = vunpack.c.l.b16 %v500
        %v645 = vunpack.c.l.b16 %v501
        %v646 = vunpack.c.l.b16 %v502
        %v647 = vunpack.c.l.b16 %v503
        %v648 = vunpack.c.l.b16 %v504
        %v649 = vpack.c.b16 %v618, %v617
        %v650 = vpack.c.b16 %v620, %v619
        %v651 = vpack.c.b16 %v622, %v621
        %v652 = vpack.c.b16 %v624, %v623
        %v653 = vpack.c.b16 %v626, %v625
        %v654 = vpack.c.b16 %v628, %v627
        %v655 = vpack.c.b16 %v630, %v629
        %v656 = vpack.c.b16 %v632, %v631
        %v657 = vpack.c.b16 %v634, %v633
        %v658 = vpack.c.b16 %v636, %v635
        %v659 = vpack.c.b16 %v638, %v637
        %v660 = vpack.c.b16 %v640, %v639
        %v661 = vpack.c.b16 %v642, %v641
        %v662 = vpack.c.b16 %v644, %v643
        %v663 = vpack.c.b16 %v646, %v645
        %v664 = vpack.c.b16 %v648, %v647
        %681 = vmatpush.bf16.msra.mxu0 %v656
        %682 = vmatpush.bf16.msra.mxu0 %v655
        %683 = vmatpush.bf16.msra.mxu0 %v654
        %684 = vmatpush.bf16.msra.mxu0 %v653
        %685 = vmatpush.bf16.msra.mxu0 %v652
        %686 = vmatpush.bf16.msra.mxu0 %v651
        %687 = vmatpush.bf16.msra.mxu0 %v650
        %688 = vmatpush.bf16.msra.mxu0 %v649
        %689 = vmatmul.bf16.gmra.mxu0 %v553
        %v690 = vpop.f32.mrf.mxu0
        %v691 = vadd.f32 0.0, %v690
        %v692 = vpop.f32.mrf.mxu0
        %v693 = vadd.f32 0.0, %v692
        %694 = vmatmul.bf16.gmra.mxu0 %v555
        %v695 = vpop.f32.mrf.mxu0
        %v696 = vadd.f32 0.0, %v695
        %v697 = vpop.f32.mrf.mxu0
        %v698 = vadd.f32 0.0, %v697
        %699 = vmatmul.bf16.gmra.mxu0 %v557
        %v700 = vpop.f32.mrf.mxu0
        %v701 = vadd.f32 0.0, %v700
        %v702 = vpop.f32.mrf.mxu0
        %v703 = vadd.f32 0.0, %v702
        %704 = vmatmul.bf16.gmra.mxu0 %v559
        %v705 = vpop.f32.mrf.mxu0
        %v706 = vadd.f32 0.0, %v705
        %v707 = vpop.f32.mrf.mxu0
        %v708 = vadd.f32 0.0, %v707
        %709 = vmatmul.bf16.gmra.mxu0 %v561
        %v710 = vpop.f32.mrf.mxu0
        %v711 = vadd.f32 0.0, %v710
        %v712 = vpop.f32.mrf.mxu0
        %v713 = vadd.f32 0.0, %v712
        %714 = vmatmul.bf16.gmra.mxu0 %v563
        %v715 = vpop.f32.mrf.mxu0
        %v716 = vadd.f32 0.0, %v715
        %v717 = vpop.f32.mrf.mxu0
        %v718 = vadd.f32 0.0, %v717
        %719 = vmatmul.bf16.gmra.mxu0 %v565
        %v720 = vpop.f32.mrf.mxu0
        %v721 = vadd.f32 0.0, %v720
        %v722 = vpop.f32.mrf.mxu0
        %v723 = vadd.f32 0.0, %v722
        %724 = vmatmul.bf16.gmra.mxu0 %v567
        %v725 = vpop.f32.mrf.mxu0
        %v726 = vadd.f32 0.0, %v725
        %v727 = vpop.f32.mrf.mxu0
        %v728 = vadd.f32 0.0, %v727
        %729 = vdwg.mxu0
        %730 = vmatpush.bf16.msra.mxu0 %v664
        %731 = vmatpush.bf16.msra.mxu0 %v663
        %732 = vmatpush.bf16.msra.mxu0 %v662
        %733 = vmatpush.bf16.msra.mxu0 %v661
        %734 = vmatpush.bf16.msra.mxu0 %v660
        %735 = vmatpush.bf16.msra.mxu0 %v659
        %736 = vmatpush.bf16.msra.mxu0 %v658
        %737 = vmatpush.bf16.msra.mxu0 %v657
        %738 = vmatmul.bf16.gmra.mxu0 %v554
        %v739 = vpop.f32.mrf.mxu0
        %v740 = vadd.f32 %v691, %v739
        %v741 = vpop.f32.mrf.mxu0
        %v742 = vadd.f32 %v693, %v741
        %743 = vmatmul.bf16.gmra.mxu0 %v556
        %v744 = vpop.f32.mrf.mxu0
        %v745 = vadd.f32 %v696, %v744
        %v746 = vpop.f32.mrf.mxu0
        %v747 = vadd.f32 %v698, %v746
        %748 = vmatmul.bf16.gmra.mxu0 %v558
        %v749 = vpop.f32.mrf.mxu0
        %v750 = vadd.f32 %v701, %v749
        %v751 = vpop.f32.mrf.mxu0
        %v752 = vadd.f32 %v703, %v751
        %753 = vmatmul.bf16.gmra.mxu0 %v560
        %v754 = vpop.f32.mrf.mxu0
        %v755 = vadd.f32 %v706, %v754
        %v756 = vpop.f32.mrf.mxu0
        %v757 = vadd.f32 %v708, %v756
        %758 = vmatmul.bf16.gmra.mxu0 %v562
        %v759 = vpop.f32.mrf.mxu0
        %v760 = vadd.f32 %v711, %v759
        %v761 = vpop.f32.mrf.mxu0
        %v762 = vadd.f32 %v713, %v761
        %763 = vmatmul.bf16.gmra.mxu0 %v564
        %v764 = vpop.f32.mrf.mxu0
        %v765 = vadd.f32 %v716, %v764
        %v766 = vpop.f32.mrf.mxu0
        %v767 = vadd.f32 %v718, %v766
        %768 = vmatmul.bf16.gmra.mxu0 %v566
        %v769 = vpop.f32.mrf.mxu0
        %v770 = vadd.f32 %v721, %v769
        %v771 = vpop.f32.mrf.mxu0
        %v772 = vadd.f32 %v723, %v771
        %773 = vmatmul.bf16.gmra.mxu0 %v568
        %v774 = vpop.f32.mrf.mxu0
        %v775 = vadd.f32 %v726, %v774
        %v776 = vpop.f32.mrf.mxu0
        %v777 = vadd.f32 %v728, %v776
        %778 = vdwg.mxu0
        %v779 = vadd.f32 %v457, %v740
        %v780 = vadd.f32 %v458, %v742
        %v781 = vadd.f32 %v459, %v745
        %v782 = vadd.f32 %v460, %v747
        %v783 = vadd.f32 %v461, %v750
        %v784 = vadd.f32 %v462, %v752
        %v785 = vadd.f32 %v463, %v755
        %v786 = vadd.f32 %v464, %v757
        %v787 = vadd.f32 %v465, %v760
        %v788 = vadd.f32 %v466, %v762
        %v789 = vadd.f32 %v467, %v765
        %v790 = vadd.f32 %v468, %v767
        %v791 = vadd.f32 %v469, %v770
        %v792 = vadd.f32 %v470, %v772
        %v793 = vadd.f32 %v471, %v775
        %v794 = vadd.f32 %v472, %v777
        %795 = vst [vmem:[#allocation2] sm:$0xff] %v779
        %796 = vst [vmem:[#allocation2 + $0x8] sm:$0xff] %v780
        %797 = vst [vmem:[#allocation2 + $0x10] sm:$0xff] %v781
        %798 = vst [vmem:[#allocation2 + $0x18] sm:$0xff] %v782
        %799 = vst [vmem:[#allocation2 + $0x20] sm:$0xff] %v783
        %800 = vst [vmem:[#allocation2 + $0x28] sm:$0xff] %v784
        %801 = vst [vmem:[#allocation2 + $0x30] sm:$0xff] %v785
        %802 = vst [vmem:[#allocation2 + $0x38] sm:$0xff] %v786
        %803 = vst [vmem:[#allocation2 + $0x40] sm:$0xff] %v787
        %804 = vst [vmem:[#allocation2 + $0x48] sm:$0xff] %v788
        %805 = vst [vmem:[#allocation2 + $0x50] sm:$0xff] %v789
        %806 = vst [vmem:[#allocation2 + $0x58] sm:$0xff] %v790
        %807 = vst [vmem:[#allocation2 + $0x60] sm:$0xff] %v791
        %808 = vst [vmem:[#allocation2 + $0x68] sm:$0xff] %v792
        %809 = vst [vmem:[#allocation2 + $0x70] sm:$0xff] %v793
        %810 = vst [vmem:[#allocation2 + $0x78] sm:$0xff] %v794
        // Predicated region
        $region86: #{graph_conv_layer.1} parent=76 // pred_check
          %p811 = pneg %p418
        $region87: #{graph_conv_layer.1} parent=76 // pred_check_branch
          %813 = sbr.rel (%p811) target = $region89
        $region88: #{graph_conv_layer.1} parent=76 // pred_region
          %v814 = vld [vmem:[#allocation2] sm:$0xff]
          %v815 = vld [vmem:[#allocation2 + $0x8] sm:$0xff]
          %v816 = vld [vmem:[#allocation2 + $0x10] sm:$0xff]
          %v817 = vld [vmem:[#allocation2 + $0x18] sm:$0xff]
          %v818 = vld [vmem:[#allocation2 + $0x20] sm:$0xff]
          %v819 = vld [vmem:[#allocation2 + $0x28] sm:$0xff]
          %v820 = vld [vmem:[#allocation2 + $0x30] sm:$0xff]
          %v821 = vld [vmem:[#allocation2 + $0x38] sm:$0xff]
          %v822 = vld [vmem:[#allocation2 + $0x40] sm:$0xff]
          %v823 = vld [vmem:[#allocation2 + $0x48] sm:$0xff]
          %v824 = vld [vmem:[#allocation2 + $0x50] sm:$0xff]
          %v825 = vld [vmem:[#allocation2 + $0x58] sm:$0xff]
          %v826 = vld [vmem:[#allocation2 + $0x60] sm:$0xff]
          %v827 = vld [vmem:[#allocation2 + $0x68] sm:$0xff]
          %v828 = vld [vmem:[#allocation2 + $0x70] sm:$0xff]
          %v829 = vld [vmem:[#allocation2 + $0x78] sm:$0xff]
          %v830 = vld [vmem:[%s417] sm:$0x1]
          %v832 = vperm.slane %v830, 0
          %v834 = vmul.f32 %v814, %v832
          %v835 = vmul.f32 %v815, %v832
          %v836 = vmul.f32 %v816, %v832
          %v837 = vmul.f32 %v817, %v832
          %v838 = vmul.f32 %v818, %v832
          %v839 = vmul.f32 %v819, %v832
          %v840 = vmul.f32 %v820, %v832
          %v841 = vmul.f32 %v821, %v832
          %v842 = vmul.f32 %v822, %v832
          %v843 = vmul.f32 %v823, %v832
          %v844 = vmul.f32 %v824, %v832
          %v845 = vmul.f32 %v825, %v832
          %v846 = vmul.f32 %v826, %v832
          %v847 = vmul.f32 %v827, %v832
          %v848 = vmul.f32 %v828, %v832
          %v849 = vmul.f32 %v829, %v832
          %v850 = vpack.c.bf16 %v835, %v834
          %v851 = vpack.c.bf16 %v837, %v836
          %v852 = vpack.c.bf16 %v839, %v838
          %v853 = vpack.c.bf16 %v841, %v840
          %v854 = vpack.c.bf16 %v843, %v842
          %v855 = vpack.c.bf16 %v845, %v844
          %v856 = vpack.c.bf16 %v847, %v846
          %v857 = vpack.c.bf16 %v849, %v848
          %v858 = vld [vmem:[%s3] sm:$0xf]
          %v859 = vld [vmem:[%s3 + $0x4] sm:$0xf]
          %v860 = vld [vmem:[%s3 + $0x8] sm:$0xf]
          %v861 = vld [vmem:[%s3 + $0xc] sm:$0xf]
          %v862 = vld [vmem:[%s3 + $0x10] sm:$0xf]
          %v863 = vld [vmem:[%s3 + $0x14] sm:$0xf]
          %v864 = vld [vmem:[%s3 + $0x18] sm:$0xf]
          %v865 = vld [vmem:[%s3 + $0x1c] sm:$0xf]
          %v866 = vld [vmem:[%s3 + $0x20] sm:$0xf]
          %v867 = vld [vmem:[%s3 + $0x24] sm:$0xf]
          %v868 = vld [vmem:[%s3 + $0x28] sm:$0xf]
          %v869 = vld [vmem:[%s3 + $0x2c] sm:$0xf]
          %v870 = vld [vmem:[%s3 + $0x30] sm:$0xf]
          %v871 = vld [vmem:[%s3 + $0x34] sm:$0xf]
          %v872 = vld [vmem:[%s3 + $0x38] sm:$0xf]
          %v873 = vld [vmem:[%s3 + $0x3c] sm:$0xf]
          %v874 = vld [vmem:[%s4] sm:$0xff]
          %v875 = vld [vmem:[%s4 + $0x8] sm:$0xff]
          %v876 = vld [vmem:[%s4 + $0x10] sm:$0xff]
          %v877 = vld [vmem:[%s4 + $0x18] sm:$0xff]
          %v878 = vld [vmem:[%s4 + $0x20] sm:$0xff]
          %v879 = vld [vmem:[%s4 + $0x28] sm:$0xff]
          %v880 = vld [vmem:[%s4 + $0x30] sm:$0xff]
          %v881 = vld [vmem:[%s4 + $0x38] sm:$0xff]
          %v882 = vld [vmem:[%s4 + $0x40] sm:$0xff]
          %v883 = vld [vmem:[%s4 + $0x48] sm:$0xff]
          %v884 = vld [vmem:[%s4 + $0x50] sm:$0xff]
          %v885 = vld [vmem:[%s4 + $0x58] sm:$0xff]
          %v886 = vld [vmem:[%s4 + $0x60] sm:$0xff]
          %v887 = vld [vmem:[%s4 + $0x68] sm:$0xff]
          %v888 = vld [vmem:[%s4 + $0x70] sm:$0xff]
          %v889 = vld [vmem:[%s4 + $0x78] sm:$0xff]
          %891 = vset.pattern.permute.xlu0 0
          %892 = vperm.xlu0 %891, %v874
          %v893 = vpop.permute.xlu0 %892
          %896 = vset.pattern.permute.xlu0 0
          %897 = vperm.xlu0 %896, %v875
          %v898 = vpop.permute.xlu0 %897
          %901 = vset.pattern.permute.xlu0 0
          %902 = vperm.xlu0 %901, %v876
          %v903 = vpop.permute.xlu0 %902
          %906 = vset.pattern.permute.xlu0 0
          %907 = vperm.xlu0 %906, %v877
          %v908 = vpop.permute.xlu0 %907
          %911 = vset.pattern.permute.xlu0 0
          %912 = vperm.xlu0 %911, %v878
          %v913 = vpop.permute.xlu0 %912
          %916 = vset.pattern.permute.xlu0 0
          %917 = vperm.xlu0 %916, %v879
          %v918 = vpop.permute.xlu0 %917
          %921 = vset.pattern.permute.xlu0 0
          %922 = vperm.xlu0 %921, %v880
          %v923 = vpop.permute.xlu0 %922
          %926 = vset.pattern.permute.xlu0 0
          %927 = vperm.xlu0 %926, %v881
          %v928 = vpop.permute.xlu0 %927
          %931 = vset.pattern.permute.xlu0 0
          %932 = vperm.xlu0 %931, %v882
          %v933 = vpop.permute.xlu0 %932
          %936 = vset.pattern.permute.xlu0 0
          %937 = vperm.xlu0 %936, %v883
          %v938 = vpop.permute.xlu0 %937
          %941 = vset.pattern.permute.xlu0 0
          %942 = vperm.xlu0 %941, %v884
          %v943 = vpop.permute.xlu0 %942
          %946 = vset.pattern.permute.xlu0 0
          %947 = vperm.xlu0 %946, %v885
          %v948 = vpop.permute.xlu0 %947
          %951 = vset.pattern.permute.xlu0 0
          %952 = vperm.xlu0 %951, %v886
          %v953 = vpop.permute.xlu0 %952
          %956 = vset.pattern.permute.xlu0 0
          %957 = vperm.xlu0 %956, %v887
          %v958 = vpop.permute.xlu0 %957
          %961 = vset.pattern.permute.xlu0 0
          %962 = vperm.xlu0 %961, %v888
          %v963 = vpop.permute.xlu0 %962
          %966 = vset.pattern.permute.xlu0 0
          %967 = vperm.xlu0 %966, %v889
          %v968 = vpop.permute.xlu0 %967
          %v986 = vunpack.c.l.b16 %v858
          %v987 = vunpack.c.l.b16 %v859
          %v988 = vunpack.c.l.b16 %v860
          %v989 = vunpack.c.l.b16 %v861
          %v990 = vunpack.c.l.b16 %v862
          %v991 = vunpack.c.l.b16 %v863
          %v992 = vunpack.c.l.b16 %v864
          %v993 = vunpack.c.l.b16 %v865
          %v994 = vunpack.c.l.b16 %v866
          %v995 = vunpack.c.l.b16 %v867
          %v996 = vunpack.c.l.b16 %v868
          %v997 = vunpack.c.l.b16 %v869
          %v998 = vunpack.c.l.b16 %v870
          %v999 = vunpack.c.l.b16 %v871
          %v1000 = vunpack.c.l.b16 %v872
          %v1001 = vunpack.c.l.b16 %v873
          %v1002 = vpack.c.b16 %v987, %v986
          %v1003 = vpack.c.b16 %v989, %v988
          %v1004 = vpack.c.b16 %v991, %v990
          %v1005 = vpack.c.b16 %v993, %v992
          %v1006 = vpack.c.b16 %v995, %v994
          %v1007 = vpack.c.b16 %v997, %v996
          %v1008 = vpack.c.b16 %v999, %v998
          %v1009 = vpack.c.b16 %v1001, %v1000
          %1018 = vmatpush.bf16.msra.mxu0 %v857
          %1019 = vmatpush.bf16.msra.mxu0 %v856
          %1020 = vmatpush.bf16.msra.mxu0 %v855
          %1021 = vmatpush.bf16.msra.mxu0 %v854
          %1022 = vmatpush.bf16.msra.mxu0 %v853
          %1023 = vmatpush.bf16.msra.mxu0 %v852
          %1024 = vmatpush.bf16.msra.mxu0 %v851
          %1025 = vmatpush.bf16.msra.mxu0 %v850
          %1026 = vmatmul.bf16.gmra.mxu0 %v1002
          %v1027 = vpop.f32.mrf.mxu0
          %v1028 = vadd.f32 %v893, %v1027
          %v1029 = vpop.f32.mrf.mxu0
          %v1030 = vadd.f32 %v898, %v1029
          %1031 = vmatmul.bf16.gmra.mxu0 %v1003
          %v1032 = vpop.f32.mrf.mxu0
          %v1033 = vadd.f32 %v903, %v1032
          %v1034 = vpop.f32.mrf.mxu0
          %v1035 = vadd.f32 %v908, %v1034
          %1036 = vmatmul.bf16.gmra.mxu0 %v1004
          %v1037 = vpop.f32.mrf.mxu0
          %v1038 = vadd.f32 %v913, %v1037
          %v1039 = vpop.f32.mrf.mxu0
          %v1040 = vadd.f32 %v918, %v1039
          %1041 = vmatmul.bf16.gmra.mxu0 %v1005
          %v1042 = vpop.f32.mrf.mxu0
          %v1043 = vadd.f32 %v923, %v1042
          %v1044 = vpop.f32.mrf.mxu0
          %v1045 = vadd.f32 %v928, %v1044
          %1046 = vmatmul.bf16.gmra.mxu0 %v1006
          %v1047 = vpop.f32.mrf.mxu0
          %v1048 = vadd.f32 %v933, %v1047
          %v1049 = vpop.f32.mrf.mxu0
          %v1050 = vadd.f32 %v938, %v1049
          %1051 = vmatmul.bf16.gmra.mxu0 %v1007
          %v1052 = vpop.f32.mrf.mxu0
          %v1053 = vadd.f32 %v943, %v1052
          %v1054 = vpop.f32.mrf.mxu0
          %v1055 = vadd.f32 %v948, %v1054
          %1056 = vmatmul.bf16.gmra.mxu0 %v1008
          %v1057 = vpop.f32.mrf.mxu0
          %v1058 = vadd.f32 %v953, %v1057
          %v1059 = vpop.f32.mrf.mxu0
          %v1060 = vadd.f32 %v958, %v1059
          %1061 = vmatmul.bf16.gmra.mxu0 %v1009
          %v1062 = vpop.f32.mrf.mxu0
          %v1063 = vadd.f32 %v963, %v1062
          %v1064 = vpop.f32.mrf.mxu0
          %v1065 = vadd.f32 %v968, %v1064
          %1066 = vdwg.mxu0
          %1067 = vst [vmem:[%s413] sm:$0xff] %v1028
          %1068 = vst [vmem:[%s413 + $0x8] sm:$0xff] %v1030
          %1069 = vst [vmem:[%s413 + $0x10] sm:$0xff] %v1033
          %1070 = vst [vmem:[%s413 + $0x18] sm:$0xff] %v1035
          %1071 = vst [vmem:[%s413 + $0x20] sm:$0xff] %v1038
          %1072 = vst [vmem:[%s413 + $0x28] sm:$0xff] %v1040
          %1073 = vst [vmem:[%s413 + $0x30] sm:$0xff] %v1043
          %1074 = vst [vmem:[%s413 + $0x38] sm:$0xff] %v1045
          %1075 = vst [vmem:[%s413 + $0x40] sm:$0xff] %v1048
          %1076 = vst [vmem:[%s413 + $0x48] sm:$0xff] %v1050
          %1077 = vst [vmem:[%s413 + $0x50] sm:$0xff] %v1053
          %1078 = vst [vmem:[%s413 + $0x58] sm:$0xff] %v1055
          %1079 = vst [vmem:[%s413 + $0x60] sm:$0xff] %v1058
          %1080 = vst [vmem:[%s413 + $0x68] sm:$0xff] %v1060
          %1081 = vst [vmem:[%s413 + $0x70] sm:$0xff] %v1063
          %1082 = vst [vmem:[%s413 + $0x78] sm:$0xff] %v1065
        $region89: #{graph_conv_layer.1} parent=76 // pred_fallthru
          _
        %s1083 = sand.u32 %s153, 1
        %s1084 = sand.u32 %s153, 1
        %s1085 = smul.addr %s1084, 128
        %s1086 = scalar_lea.vmem [#allocation4], %s1085
        // Predicated region
        $region90: #{graph_conv_layer.1} parent=76 // pred_check
          %p1087 = pneg %p163
        $region91: #{graph_conv_layer.1} parent=76 // pred_check_branch
          %1089 = sbr.rel (%p1087) target = $region93
        $region92: #{graph_conv_layer.1} parent=76 // pred_region
          %s1090 = smul.addr %s20, 8
          %s1091 = scalar_lea.vmem %s5, %s1090
          // Predicated region
          $region94: #{graph_conv_layer.1} parent=92 // pred_check
            _
          $region95: #{graph_conv_layer.1} parent=92 // pred_check_branch
            %1093 = sbr.rel (0) target = $region97
          $region96: #{graph_conv_layer.1} parent=92 // pred_region
            // Predicated region
            $region98: #{graph_conv_layer.1} parent=96 // pred_check
              _
            $region99: #{graph_conv_layer.1} parent=96 // pred_check_branch
              %1095 = sbr.rel (0) target = $region101
            $region100: #{graph_conv_layer.1} parent=96 // pred_region
              // Predicated region
              $region113: #{graph_conv_layer.1} parent=100 // pred_check
                _
              $region114: #{graph_conv_layer.1} parent=100 // pred_check_branch
                %1141 = sbr.rel (0) target = $region116
              $region115: #{graph_conv_layer.1} parent=100 // pred_region
                loop: start=0, step=1, limit=1
                $region117: #{graph_conv_layer.1} parent=115 // loop_pre_header
                  _
                $region118: #{graph_conv_layer.1} parent=115 // loop_header
                  %s1143 = sphi 0, %s1147
                  %p1144 = scmp.ge.s32.totalorder %s1143, 1
                  %s1148 = sphi %s1086, %s1086
                  %s1149 = sphi %s1091, %s1091
                $region119: #{graph_conv_layer.1} parent=115 // loop_header_branch
                  %1146 = sbr.rel (%p1144) target = $region123
                $region120: #{graph_conv_layer.1} parent=115 // loop_body
                  %v1150 = vld [vmem:[%s1148] sm:$0xff]
                  %1151 = vst [vmem:[%s1149] sm:$0xff] %v1150
                  %v1152 = vld [vmem:[%s1148 + $0x8] sm:$0xff]
                  %1153 = vst [vmem:[%s1149 + $0x10] sm:$0xff] %v1152
                  %v1154 = vld [vmem:[%s1148 + $0x10] sm:$0xff]
                  %1155 = vst [vmem:[%s1149 + $0x20] sm:$0xff] %v1154
                  %v1156 = vld [vmem:[%s1148 + $0x18] sm:$0xff]
                  %1157 = vst [vmem:[%s1149 + $0x30] sm:$0xff] %v1156
                  %v1158 = vld [vmem:[%s1148 + $0x20] sm:$0xff]
                  %1159 = vst [vmem:[%s1149 + $0x40] sm:$0xff] %v1158
                  %v1160 = vld [vmem:[%s1148 + $0x28] sm:$0xff]
                  %1161 = vst [vmem:[%s1149 + $0x50] sm:$0xff] %v1160
                  %v1162 = vld [vmem:[%s1148 + $0x30] sm:$0xff]
                  %1163 = vst [vmem:[%s1149 + $0x60] sm:$0xff] %v1162
                  %v1164 = vld [vmem:[%s1148 + $0x38] sm:$0xff]
                  %1165 = vst [vmem:[%s1149 + $0x70] sm:$0xff] %v1164
                  %v1166 = vld [vmem:[%s1148 + $0x40] sm:$0xff]
                  %1167 = vst [vmem:[%s1149 + $0x80] sm:$0xff] %v1166
                  %v1168 = vld [vmem:[%s1148 + $0x48] sm:$0xff]
                  %1169 = vst [vmem:[%s1149 + $0x90] sm:$0xff] %v1168
                  %v1170 = vld [vmem:[%s1148 + $0x50] sm:$0xff]
                  %1171 = vst [vmem:[%s1149 + $0xa0] sm:$0xff] %v1170
                  %v1172 = vld [vmem:[%s1148 + $0x58] sm:$0xff]
                  %1173 = vst [vmem:[%s1149 + $0xb0] sm:$0xff] %v1172
                  %v1174 = vld [vmem:[%s1148 + $0x60] sm:$0xff]
                  %1175 = vst [vmem:[%s1149 + $0xc0] sm:$0xff] %v1174
                  %v1176 = vld [vmem:[%s1148 + $0x68] sm:$0xff]
                  %1177 = vst [vmem:[%s1149 + $0xd0] sm:$0xff] %v1176
                  %v1178 = vld [vmem:[%s1148 + $0x70] sm:$0xff]
                  %1179 = vst [vmem:[%s1149 + $0xe0] sm:$0xff] %v1178
                  %v1180 = vld [vmem:[%s1148 + $0x78] sm:$0xff]
                  %1181 = vst [vmem:[%s1149 + $0xf0] sm:$0xff] %v1180
                $region121: #{graph_conv_layer.1} parent=115 // loop_footer
                  %s1147 = sadd.s32 1, %s1143
                $region122: #{graph_conv_layer.1} parent=115 // loop_footer_branch
                  %1142 = sbr.rel target = $region118
                $region123: #{graph_conv_layer.1} parent=115 // loop_exit
                  _
              $region116: #{graph_conv_layer.1} parent=100 // pred_fallthru
                _
              // Predicated region
              $region124: #{graph_conv_layer.1} parent=100 // pred_check
                _
              $region125: #{graph_conv_layer.1} parent=100 // pred_check_branch
                %1183 = sbr.rel target = $region127
              $region126: #{graph_conv_layer.1} parent=100 // pred_region
                _
              $region127: #{graph_conv_layer.1} parent=100 // pred_fallthru
                _
            $region101: #{graph_conv_layer.1} parent=96 // pred_fallthru
              _
            // Predicated region
            $region102: #{graph_conv_layer.1} parent=96 // pred_check
              _
            $region103: #{graph_conv_layer.1} parent=96 // pred_check_branch
              %1097 = sbr.rel target = $region105
            $region104: #{graph_conv_layer.1} parent=96 // pred_region
              %s1099 = ssub.s32 256, 1
              loop: start=0, step=1, limit=1
              $region106: #{graph_conv_layer.1} parent=104 // loop_pre_header
                _
              $region107: #{graph_conv_layer.1} parent=104 // loop_header
                %s1101 = sphi 0, %s1105
                %p1102 = scmp.ge.s32.totalorder %s1101, 1
                %s1106 = sphi %s1086, %s1086
                %s1107 = sphi %s1091, %s1091
              $region108: #{graph_conv_layer.1} parent=104 // loop_header_branch
                %1104 = sbr.rel (%p1102) target = $region112
              $region109: #{graph_conv_layer.1} parent=104 // loop_body
                %v1108 = vld [vmem:[%s1106] sm:%s1099]
                %1109 = vst [vmem:[%s1107] sm:%s1099] %v1108
                %v1110 = vld [vmem:[%s1106 + $0x8] sm:%s1099]
                %1111 = vst [vmem:[%s1107 + $0x10] sm:%s1099] %v1110
                %v1112 = vld [vmem:[%s1106 + $0x10] sm:%s1099]
                %1113 = vst [vmem:[%s1107 + $0x20] sm:%s1099] %v1112
                %v1114 = vld [vmem:[%s1106 + $0x18] sm:%s1099]
                %1115 = vst [vmem:[%s1107 + $0x30] sm:%s1099] %v1114
                %v1116 = vld [vmem:[%s1106 + $0x20] sm:%s1099]
                %1117 = vst [vmem:[%s1107 + $0x40] sm:%s1099] %v1116
                %v1118 = vld [vmem:[%s1106 + $0x28] sm:%s1099]
                %1119 = vst [vmem:[%s1107 + $0x50] sm:%s1099] %v1118
                %v1120 = vld [vmem:[%s1106 + $0x30] sm:%s1099]
                %1121 = vst [vmem:[%s1107 + $0x60] sm:%s1099] %v1120
                %v1122 = vld [vmem:[%s1106 + $0x38] sm:%s1099]
                %1123 = vst [vmem:[%s1107 + $0x70] sm:%s1099] %v1122
                %v1124 = vld [vmem:[%s1106 + $0x40] sm:%s1099]
                %1125 = vst [vmem:[%s1107 + $0x80] sm:%s1099] %v1124
                %v1126 = vld [vmem:[%s1106 + $0x48] sm:%s1099]
                %1127 = vst [vmem:[%s1107 + $0x90] sm:%s1099] %v1126
                %v1128 = vld [vmem:[%s1106 + $0x50] sm:%s1099]
                %1129 = vst [vmem:[%s1107 + $0xa0] sm:%s1099] %v1128
                %v1130 = vld [vmem:[%s1106 + $0x58] sm:%s1099]
                %1131 = vst [vmem:[%s1107 + $0xb0] sm:%s1099] %v1130
                %v1132 = vld [vmem:[%s1106 + $0x60] sm:%s1099]
                %1133 = vst [vmem:[%s1107 + $0xc0] sm:%s1099] %v1132
                %v1134 = vld [vmem:[%s1106 + $0x68] sm:%s1099]
                %1135 = vst [vmem:[%s1107 + $0xd0] sm:%s1099] %v1134
                %v1136 = vld [vmem:[%s1106 + $0x70] sm:%s1099]
                %1137 = vst [vmem:[%s1107 + $0xe0] sm:%s1099] %v1136
                %v1138 = vld [vmem:[%s1106 + $0x78] sm:%s1099]
                %1139 = vst [vmem:[%s1107 + $0xf0] sm:%s1099] %v1138
              $region110: #{graph_conv_layer.1} parent=104 // loop_footer
                %s1105 = sadd.s32 1, %s1101
              $region111: #{graph_conv_layer.1} parent=104 // loop_footer_branch
                %1100 = sbr.rel target = $region107
              $region112: #{graph_conv_layer.1} parent=104 // loop_exit
                _
            $region105: #{graph_conv_layer.1} parent=96 // pred_fallthru
              _
          $region97: #{graph_conv_layer.1} parent=92 // pred_fallthru
            _
          %1184 = vnop
        $region93: #{graph_conv_layer.1} parent=76 // pred_fallthru
          _
      $region77: #{graph_conv_layer.1} parent=5 // pred_fallthru
        _
      %p1185 = scmp.le.s32.totalorder 2, %s11
      // Predicated region
      $region128: #{graph_conv_layer.1} parent=5 // pred_check
        %p1186 = pneg %p1185
      $region129: #{graph_conv_layer.1} parent=5 // pred_check_branch
        %1188 = sbr.rel (%p1186) target = $region131
      $region130: #{graph_conv_layer.1} parent=5 // pred_region
        %s1189 = ssub.s32 %s11, 2
        // Predicated region
        $region132: #{graph_conv_layer.1} parent=130 // pred_check
          %p1190 = pneg %p169
        $region133: #{graph_conv_layer.1} parent=130 // pred_check_branch
          %1192 = sbr.rel (%p1190) target = $region135
        $region134: #{graph_conv_layer.1} parent=130 // pred_region
          %s1193 = sand.u32 %s154, 1
          %s1194 = sand.u32 %s154, 1
          %s1195 = smul.addr %s1194, 128
          %s1196 = scalar_lea.vmem [#allocation4], %s1195
        $region135: #{graph_conv_layer.1} parent=130 // pred_fallthru
          _
      $region131: #{graph_conv_layer.1} parent=5 // pred_fallthru
        _
    $region6: #{graph_conv_layer.1} parent=1 // loop_footer
      %s15 = sadd.s32 1, %s11
    $region7: #{graph_conv_layer.1} parent=1 // loop_footer_branch
      %10 = sbr.rel target = $region3
    $region8: #{graph_conv_layer.1} parent=1 // loop_exit
      _

</llo_original>
